<compile_context>
chip_gen: v6e
topology: v6e:2x2x1
jax: 0.10.0
libtpu: 0.0.40
codegen_flags: <defaults>
</compile_context>

<pallas_src>
import functools

import numpy as np
import jax
import jax.numpy as jnp
from jax.experimental import pallas as pl
from jax.experimental.pallas import tpu as pltpu

LANE = 128     # TPU lane width; total per-layer feature dim is padded to a multiple of this
TILE_N = 128   # node tile (dst and src); 128 is safe on v5e/v6e/v7x (256 ok on v6e/v7x)


def _round_up(v, m):
    return (v + m - 1) // m * m


# ---------------------------------------------------------------------------
# Kernel A: per-node-tile projection + attention score vectors (pure MXU work).
#   h      = x @ W_pad                   -> [TN, hf_pad]   (stored bf16)
#   a_src  = h @ A_src_blockdiag         -> [TN, LANE]  (col hd = per-head src score)
#   a_dst  = h @ A_dst_blockdiag         -> [TN, LANE]
# All dots are f32 x f32 (bf16 x bf16 dots are rejected by the interpret/CPU executor).
# ---------------------------------------------------------------------------
def _project_kernel(x_ref, w_ref, asrc_ref, adst_ref,
                    h_out_ref, asrc_out_ref, adst_out_ref):
    x = x_ref[...].astype(jnp.float32)
    h = jnp.dot(x, w_ref[...], preferred_element_type=jnp.float32)
    h_out_ref[...] = h.astype(jnp.bfloat16)          # bf16 storage halves the big h stream
    asrc_out_ref[...] = jnp.dot(h, asrc_ref[...], preferred_element_type=jnp.float32)
    adst_out_ref[...] = jnp.dot(h, adst_ref[...], preferred_element_type=jnp.float32)


def _project(x_pad, w_pad, a_src_bd, a_dst_bd):
    n_pad, c_in = x_pad.shape
    hf_pad = w_pad.shape[1]
    grid = (n_pad // TILE_N,)
    return pl.pallas_call(
        _project_kernel,
        out_shape=(jax.ShapeDtypeStruct((n_pad, hf_pad), jnp.bfloat16),
                   jax.ShapeDtypeStruct((n_pad, LANE), jnp.float32),
                   jax.ShapeDtypeStruct((n_pad, LANE), jnp.float32)),
        grid_spec=pltpu.PrefetchScalarGridSpec(
            num_scalar_prefetch=0, grid=grid,
            in_specs=[pl.BlockSpec((TILE_N, c_in), lambda i: (i, 0)),
                      pl.BlockSpec((c_in, hf_pad), lambda i: (0, 0)),
                      pl.BlockSpec((hf_pad, LANE), lambda i: (0, 0)),
                      pl.BlockSpec((hf_pad, LANE), lambda i: (0, 0))],
            out_specs=[pl.BlockSpec((TILE_N, hf_pad), lambda i: (i, 0)),
                       pl.BlockSpec((TILE_N, LANE), lambda i: (i, 0)),
                       pl.BlockSpec((TILE_N, LANE), lambda i: (i, 0))]),
        compiler_params=pltpu.CompilerParams(dimension_semantics=("parallel",)),
    )(x_pad, w_pad, a_src_bd, a_dst_bd)


# ---------------------------------------------------------------------------
# Kernel B: attention + aggregation. Grid = (dst_tile, schedule_step); the schedule
# (scalar-prefetched) lists, per dst tile, only the src tiles containing >= 1 edge.
# Flash-attention style online softmax in VMEM scratch, heads densely packed in lanes.
# ---------------------------------------------------------------------------
def _attention_kernel(heads, f, apply_elu,
                      cnt_ref, tl_ref,                       # scalar-prefetch (SMEM)
                      a_dst_ref, a_srcT_ref, h_ref, mask_ref, bias_ref,
                      out_ref, m_sc, l_sc, acc_sc):
    i = pl.program_id(0)
    j = pl.program_id(1)
    cnt = cnt_ref[i]

    @pl.when(j == 0)
    def _():
        # NOTE(robustness): m init (-1e30) << mask value (-1e9). A fully-masked src tile
        # seen before any real edge leaves spurious exp(0)=1 mass in l/acc, but the first
        # real edge raises m by ~1e9, so corr = exp(m_old - m_new) underflows to exactly 0
        # and cancels it. Self-loops are added for every row (incl. padded rows), so every
        # row eventually sees a real edge and l > 0 at finalize. Do not shrink these
        # magnitudes or change their dtypes.
        m_sc[...] = jnp.full_like(m_sc, -1e30)
        l_sc[...] = jnp.zeros_like(l_sc)
        acc_sc[...] = jnp.zeros_like(acc_sc)

    @pl.when(j < cnt)   # trailing steps of shorter per-dst-tile schedules are no-ops
    def _():
        edge_ok = mask_ref[...] != 0                             # [TD, TS], hoisted over heads
        for hd in range(heads):                                  # static unroll (heads small)
            a_d = a_dst_ref[:, hd:hd + 1]                        # [TD, 1]  f32
            a_s = a_srcT_ref[hd:hd + 1, :].astype(jnp.float32)   # [1,  TS] (bf16 stream)
            e = a_d + a_s
            e = jnp.where(e >= 0.0, e, 0.2 * e)                  # LeakyReLU(0.2)
            e = jnp.where(edge_ok, e, -1e9)                      # edge mask (int8 select)
            m_prev = m_sc[:, hd:hd + 1]
            m_new = jnp.maximum(m_prev, jnp.max(e, axis=-1, keepdims=True))
            corr = jnp.exp(m_prev - m_new)
            p = jnp.exp(e - m_new)                               # [TD, TS] f32
            l_sc[:, hd:hd + 1] = corr * l_sc[:, hd:hd + 1] + jnp.sum(p, axis=-1, keepdims=True)
            sl = slice(hd * f, (hd + 1) * f)                     # densely packed head slice
            # f32 x f32 dot (bf16 x bf16 = f32 is unsupported by the interpret executor).
            agg = jnp.dot(p, h_ref[:, sl].astype(jnp.float32),
                          preferred_element_type=jnp.float32)
            acc_sc[:, sl] = corr * acc_sc[:, sl] + agg
            m_sc[:, hd:hd + 1] = m_new

    @pl.when(j == cnt - 1)
    def _():
        out_ref[...] = jnp.zeros_like(out_ref)                   # padded lanes must be 0 (not stale VMEM)
        bias = bias_ref[0:1, :]
        for hd in range(heads):
            sl = slice(hd * f, (hd + 1) * f)
            o = acc_sc[:, sl] / l_sc[:, hd:hd + 1] + bias[:, sl]
            if apply_elu:
                # exp only on the clamped (non-positive) branch -> no overflow.
                o = jnp.where(o > 0.0, o, jnp.exp(jnp.minimum(o, 0.0)) - 1.0)
            out_ref[:, sl] = o.astype(out_ref.dtype)


def _attention(counts, tlist, a_dst, a_srcT, h, mask_i8, bias, *,
               heads, f, apply_elu, out_dtype, max_cnt):
    n_pad, hf_pad = h.shape
    n_tiles = n_pad // TILE_N
    srows = a_srcT.shape[0]
    kernel = functools.partial(_attention_kernel, heads, f, apply_elu)

    def src_tile(i, j, cnt, tl):
        return tl[i * max_cnt + j]          # data-dependent src tile index (SMEM prefetch)

    return pl.pallas_call(
        kernel,
        out_shape=jax.ShapeDtypeStruct((n_pad, hf_pad), out_dtype),
        grid_spec=pltpu.PrefetchScalarGridSpec(
            num_scalar_prefetch=2,
            grid=(n_tiles, max_cnt),
            in_specs=[
                pl.BlockSpec((TILE_N, LANE),                      # a_dst (f32, resident per i)
                             lambda i, j, cnt, tl: (i, 0)),
                pl.BlockSpec((srows, TILE_N),                     # a_src^T (bf16, 8 rows)
                             lambda i, j, cnt, tl: (0, src_tile(i, j, cnt, tl))),
                pl.BlockSpec((TILE_N, hf_pad),                    # h (src tile, bf16)
                             lambda i, j, cnt, tl: (src_tile(i, j, cnt, tl), 0)),
                pl.BlockSpec((TILE_N, TILE_N),                    # int8 edge mask
                             lambda i, j, cnt, tl: (i, src_tile(i, j, cnt, tl))),
                pl.BlockSpec((8, hf_pad),                         # bias (row 0 real)
                             lambda i, j, cnt, tl: (0, 0)),
            ],
            out_specs=pl.BlockSpec((TILE_N, hf_pad), lambda i, j, cnt, tl: (i, 0)),
            scratch_shapes=[pltpu.VMEM((TILE_N, LANE), jnp.float32),    # running max  (col = head)
                            pltpu.VMEM((TILE_N, LANE), jnp.float32),    # running denom
                            pltpu.VMEM((TILE_N, hf_pad), jnp.float32)]  # running numerator
        ),
        compiler_params=pltpu.CompilerParams(
            dimension_semantics=("parallel", "arbitrary")),
    )(counts, tlist, a_dst, a_srcT, h, mask_i8, bias)


# ---------------------------------------------------------------------------
# Wrapper: host-side graph preprocessing (once per graph), padding / lane-dense layout
# plumbing and the two GATConv layers.
# ---------------------------------------------------------------------------
def gat_forward(x, edge_index, params, *, heads, hidden, out_ch):
    n, c = x.shape
    n_pad = _round_up(max(n, TILE_N), TILE_N)
    c_pad = _round_up(c, LANE)
    n_tiles = n_pad // TILE_N

    # ---- host-side graph preprocessing (numpy; done once per graph, not jitted) ----
    ei = np.asarray(edge_index)
    adj = np.zeros((n_pad, n_pad), np.int8)
    adj[ei[1], ei[0]] = 1                       # adj[dst, src]
    # TODO(synk): PyG softmax counts parallel (duplicate) edges separately; the dense
    #             adjacency collapses them (results differ only on multigraphs).
    np.fill_diagonal(adj, 1)                    # add_self_loops=True (also on padded rows so
                                                # every dst row/tile has >= 1 real edge)
    tile_nz = adj.reshape(n_tiles, TILE_N, n_tiles, TILE_N).any(axis=(1, 3))
    counts = tile_nz.sum(axis=-1).astype(np.int32)          # >= 1 thanks to self-loops
    max_cnt = int(counts.max())
    tlist = np.zeros((n_tiles, max_cnt), np.int32)
    for i in range(n_tiles):
        nz = np.nonzero(tile_nz[i])[0].astype(np.int32)
        tlist[i, :nz.size] = nz
        tlist[i, nz.size:] = nz[-1]             # repeat last valid index: same block index
                                                # -> no extra DMA; compute skipped via pl.when
    mask_i8 = jnp.asarray(adj)
    counts_j = jnp.asarray(counts)
    tlist_j = jnp.asarray(tlist.reshape(-1))

    x_pad = jnp.zeros((n_pad, c_pad), jnp.float32).at[:n, :c].set(x.astype(jnp.float32))

    # ---- layer-1 padded params: heads packed densely, total width padded to 128 ----
    w1, as1, ad1, b1 = params["w1"], params["att_src1"], params["att_dst1"], params["bias1"]
    hf1 = heads * hidden
    hf1_pad = _round_up(hf1, LANE)
    w1_pad = jnp.zeros((c_pad, hf1_pad), jnp.float32).at[:c, :hf1].set(w1)
    asrc1_bd = jnp.zeros((hf1_pad, LANE), jnp.float32)
    adst1_bd = jnp.zeros((hf1_pad, LANE), jnp.float32)
    for hd in range(heads):
        r = slice(hd * hidden, (hd + 1) * hidden)
        asrc1_bd = asrc1_bd.at[r, hd].set(as1[hd])
        adst1_bd = adst1_bd.at[r, hd].set(ad1[hd])
    b1_pad = jnp.zeros((8, hf1_pad), jnp.float32).at[0, :hf1].set(b1)

    # ---- layer-2 padded params (heads=1, concat=False) ----
    w2, as2, ad2, b2 = params["w2"], params["att_src2"], params["att_dst2"], params["bias2"]
    hf2_pad = _round_up(out_ch, LANE)
    w2_pad = jnp.zeros((hf1_pad, hf2_pad), jnp.float32).at[:hf1, :out_ch].set(w2)
    asrc2_bd = jnp.zeros((hf2_pad, LANE), jnp.float32).at[:out_ch, 0].set(as2[0])
    adst2_bd = jnp.zeros((hf2_pad, LANE), jnp.float32).at[:out_ch, 0].set(ad2[0])
    b2_pad = jnp.zeros((8, hf2_pad), jnp.float32).at[0, :out_ch].set(b2)

    # dropout(p=0.6) on inputs / attention coefficients is identity in eval mode.

    # ---- layer 1: GATConv(C, hidden, heads, concat=True) + ELU ----
    h1, asrc1, adst1 = _project(x_pad, w1_pad, asrc1_bd, adst1_bd)
    srows1 = _round_up(max(heads, 1), 8)
    # Tiny transpose in the wrapper -> [srows, n_pad] bf16 slab, the re-fetched stream.
    asrc1_t = asrc1[:, :srows1].T.astype(jnp.bfloat16)
    h1_out = _attention(counts_j, tlist_j, adst1, asrc1_t, h1, mask_i8, b1_pad,
                        heads=heads, f=hidden, apply_elu=True,
                        out_dtype=jnp.bfloat16, max_cnt=max_cnt)

    # ---- layer 2: GATConv(heads*hidden, out, heads=1, concat=False) ----
    h2, asrc2, adst2 = _project(h1_out, w2_pad, asrc2_bd, adst2_bd)
    asrc2_t = asrc2[:, :8].T.astype(jnp.bfloat16)
    out_pad = _attention(counts_j, tlist_j, adst2, asrc2_t, h2, mask_i8, b2_pad,
                         heads=1, f=out_ch, apply_elu=False,
                         out_dtype=jnp.float32, max_cnt=max_cnt)

    return out_pad[:n, :out_ch]


# ---------------------------------------------------------------------------
# Pure-JAX f32 reference (PyG GATConv eval-mode semantics) for a sanity check.
# ---------------------------------------------------------------------------
def _gat_reference(x, edge_index, params, heads, hidden, out_ch):
    n = x.shape[0]
    adj = jnp.zeros((n, n), jnp.float32).at[edge_index[1], edge_index[0]].set(1.0)
    adj = jnp.maximum(adj, jnp.eye(n, dtype=jnp.float32))

    def conv(h_in, w, a_s, a_d, b, nh, fo, concat):
        h = h_in @ w
        outs = []
        for hd in range(nh):
            hh = h[:, hd * fo:(hd + 1) * fo]
            s_src = hh @ a_s[hd]
            s_dst = hh @ a_d[hd]
            e = s_dst[:, None] + s_src[None, :]
            e = jnp.where(e >= 0, e, 0.2 * e)
            e = jnp.where(adj > 0, e, -1e9)
            al = jax.nn.softmax(e, axis=-1)
            outs.append(al @ hh)
        o = jnp.concatenate(outs, -1) if concat else sum(outs) / nh
        return o + b

    h1 = conv(x, params["w1"], params["att_src1"], params["att_dst1"], params["bias1"],
              heads, hidden, True)
    h1 = jnp.where(h1 > 0, h1, jnp.exp(jnp.minimum(h1, 0.0)) - 1.0)
    return conv(h1, params["w2"], params["att_src2"], params["att_dst2"], params["bias2"],
                1, out_ch, False)


if __name__ == "__main__":
    N, C, HIDDEN, HEADS, OUT = 16, 8, 8, 4, 4

    key = jax.random.PRNGKey(0)
    ks = jax.random.split(key, 9)
    x = jax.random.normal(ks[0], (N, C), jnp.float32)

    # Deterministic synthetic parameters (shapes follow GATConv __init__).
    params = {
        # conv1: GATConv(C, HIDDEN, heads=HEADS, concat=True)
        "w1":       0.1 * jax.random.normal(ks[1], (C, HEADS * HIDDEN), jnp.float32),
        "att_src1": 0.1 * jax.random.normal(ks[2], (HEADS, HIDDEN), jnp.float32),
        "att_dst1": 0.1 * jax.random.normal(ks[3], (HEADS, HIDDEN), jnp.float32),
        "bias1":    0.1 * jax.random.normal(ks[4], (HEADS * HIDDEN,), jnp.float32),
        # conv2: GATConv(HEADS*HIDDEN, OUT, heads=1, concat=False)
        "w2":       0.1 * jax.random.normal(ks[5], (HEADS * HIDDEN, OUT), jnp.float32),
        "att_src2": 0.1 * jax.random.normal(ks[6], (1, OUT), jnp.float32),
        "att_dst2": 0.1 * jax.random.normal(ks[7], (1, OUT), jnp.float32),
        "bias2":    0.1 * jax.random.normal(ks[8], (OUT,), jnp.float32),
    }

    # Deterministic small graph: bidirectional ring + forward chords of stride 4.
    src = jnp.arange(N, dtype=jnp.int32)
    nxt = (src + 1) % N
    chord = (src + 4) % N
    edge_index = jnp.concatenate(
        [jnp.stack([src, nxt]), jnp.stack([nxt, src]), jnp.stack([src, chord])],
        axis=1)  # [2, 48]; row 0 = source, row 1 = target (PyG convention)

    # gat_forward is called eagerly (graph schedule is built host-side with numpy once per
    # graph); each pallas_call is compiled individually.
    out = jax.block_until_ready(
        gat_forward(x, edge_index, params, heads=HEADS, hidden=HIDDEN, out_ch=OUT))
    assert out.shape == (N, OUT) and out.dtype == jnp.float32

    ref = jax.block_until_ready(_gat_reference(x, edge_index, params, HEADS, HIDDEN, OUT))
    err = float(jnp.max(jnp.abs(out - ref)))
    assert err < 2e-2, f"max |kernel - reference| = {err}"
    print("KERNEL_OK")
</pallas_src>

<mosaic_0001>
module attributes {stable_mosaic.version = 11 : i64} {
  func.func @_project_kernel(%arg0: i32, %arg1: memref<128x128xf32, #tpu.memory_space<vmem>>, %arg2: memref<128x128xf32, #tpu.memory_space<vmem>>, %arg3: memref<128x128xf32, #tpu.memory_space<vmem>>, %arg4: memref<128x128xf32, #tpu.memory_space<vmem>>, %arg5: memref<128x128xbf16, #tpu.memory_space<vmem>>, %arg6: memref<128x128xf32, #tpu.memory_space<vmem>>, %arg7: memref<128x128xf32, #tpu.memory_space<vmem>>) attributes {dimension_semantics = [#tpu.dimension_semantics<parallel>], iteration_bounds = array<i64: 1>, scalar_prefetch = 0 : i64, scratch_operands = 0 : i64, tpu.core_type = #tpu.core_type<tc>, window_params = [{transform_indices = @transform_0, window_bounds = array<i64: 128, 128>}, {pipeline_mode = #tpu.pipeline_mode<synchronous>, transform_indices = @transform_1, window_bounds = array<i64: 128, 128>}, {pipeline_mode = #tpu.pipeline_mode<synchronous>, transform_indices = @transform_2, window_bounds = array<i64: 128, 128>}, {pipeline_mode = #tpu.pipeline_mode<synchronous>, transform_indices = @transform_3, window_bounds = array<i64: 128, 128>}, {transform_indices = @transform_4, window_bounds = array<i64: 128, 128>}, {transform_indices = @transform_5, window_bounds = array<i64: 128, 128>}, {transform_indices = @transform_6, window_bounds = array<i64: 128, 128>}]} {
    %c0 = arith.constant 0 : index
    %c0_0 = arith.constant 0 : index
    %0 = vector.load %arg1[%c0, %c0_0] : memref<128x128xf32, #tpu.memory_space<vmem>>, vector<128x128xf32>
    %c0_1 = arith.constant 0 : index
    %c0_2 = arith.constant 0 : index
    %1 = vector.load %arg2[%c0_1, %c0_2] : memref<128x128xf32, #tpu.memory_space<vmem>>, vector<128x128xf32>
    %cst = arith.constant dense<0.000000e+00> : vector<128x128xf32>
    %2 = tpu.matmul %0, %1, %cst {dimension_numbers = #tpu.dot_dimension_numbers<[1], [0], [0], [1], [0, 0, 1, 1], [], []>} : vector<128x128xf32>, vector<128x128xf32>, vector<128x128xf32> -> vector<128x128xf32>
    %3 = arith.truncf %2 : vector<128x128xf32> to vector<128x128xbf16>
    %c0_3 = arith.constant 0 : index
    %c0_4 = arith.constant 0 : index
    %4 = vector.load %arg5[%c0_3, %c0_4] : memref<128x128xbf16, #tpu.memory_space<vmem>>, vector<128x128xbf16>
    tpu.vector_store %arg5[%c0_3, %c0_4], %3 {strides = array<i32>} : memref<128x128xbf16, #tpu.memory_space<vmem>>, vector<128x128xbf16>,
    %c0_5 = arith.constant 0 : index
    %c0_6 = arith.constant 0 : index
    %5 = vector.load %arg3[%c0_5, %c0_6] : memref<128x128xf32, #tpu.memory_space<vmem>>, vector<128x128xf32>
    %cst_7 = arith.constant dense<0.000000e+00> : vector<128x128xf32>
    %6 = tpu.matmul %2, %5, %cst_7 {dimension_numbers = #tpu.dot_dimension_numbers<[1], [0], [0], [1], [0, 0, 1, 1], [], []>} : vector<128x128xf32>, vector<128x128xf32>, vector<128x128xf32> -> vector<128x128xf32>
    %c0_8 = arith.constant 0 : index
    %c0_9 = arith.constant 0 : index
    %7 = vector.load %arg6[%c0_8, %c0_9] : memref<128x128xf32, #tpu.memory_space<vmem>>, vector<128x128xf32>
    tpu.vector_store %arg6[%c0_8, %c0_9], %6 {strides = array<i32>} : memref<128x128xf32, #tpu.memory_space<vmem>>, vector<128x128xf32>,
    %c0_10 = arith.constant 0 : index
    %c0_11 = arith.constant 0 : index
    %8 = vector.load %arg4[%c0_10, %c0_11] : memref<128x128xf32, #tpu.memory_space<vmem>>, vector<128x128xf32>
    %cst_12 = arith.constant dense<0.000000e+00> : vector<128x128xf32>
    %9 = tpu.matmul %2, %8, %cst_12 {dimension_numbers = #tpu.dot_dimension_numbers<[1], [0], [0], [1], [0, 0, 1, 1], [], []>} : vector<128x128xf32>, vector<128x128xf32>, vector<128x128xf32> -> vector<128x128xf32>
    %c0_13 = arith.constant 0 : index
    %c0_14 = arith.constant 0 : index
    %10 = vector.load %arg7[%c0_13, %c0_14] : memref<128x128xf32, #tpu.memory_space<vmem>>, vector<128x128xf32>
    tpu.vector_store %arg7[%c0_13, %c0_14], %9 {strides = array<i32>} : memref<128x128xf32, #tpu.memory_space<vmem>>, vector<128x128xf32>,
    return
  }
  func.func @transform_0(%arg0: i32) -> (i32, i32) {
    %c0_i32 = arith.constant 0 : i32
    %c0_i32_0 = arith.constant 0 : i32
    return %arg0, %c0_i32 : i32, i32
  }
  func.func @transform_1(%arg0: i32) -> (i32, i32) {
    %c0_i32 = arith.constant 0 : i32
    %c0_i32_0 = arith.constant 0 : i32
    %c0_i32_1 = arith.constant 0 : i32
    return %c0_i32, %c0_i32_0 : i32, i32
  }
  func.func @transform_2(%arg0: i32) -> (i32, i32) {
    %c0_i32 = arith.constant 0 : i32
    %c0_i32_0 = arith.constant 0 : i32
    %c0_i32_1 = arith.constant 0 : i32
    return %c0_i32, %c0_i32_0 : i32, i32
  }
  func.func @transform_3(%arg0: i32) -> (i32, i32) {
    %c0_i32 = arith.constant 0 : i32
    %c0_i32_0 = arith.constant 0 : i32
    %c0_i32_1 = arith.constant 0 : i32
    return %c0_i32, %c0_i32_0 : i32, i32
  }
  func.func @transform_4(%arg0: i32) -> (i32, i32) {
    %c0_i32 = arith.constant 0 : i32
    %c0_i32_0 = arith.constant 0 : i32
    return %arg0, %c0_i32 : i32, i32
  }
  func.func @transform_5(%arg0: i32) -> (i32, i32) {
    %c0_i32 = arith.constant 0 : i32
    %c0_i32_0 = arith.constant 0 : i32
    return %arg0, %c0_i32 : i32, i32
  }
  func.func @transform_6(%arg0: i32) -> (i32, i32) {
    %c0_i32 = arith.constant 0 : i32
    %c0_i32_0 = arith.constant 0 : i32
    return %arg0, %c0_i32 : i32, i32
  }
}

</mosaic_0001>

<llo_original>
// kernel: tpu_custom_call.1
$region0: #{tpu_custom_call.1}
  #allocation0 [shape = 'u32[]', space=smem, size = 0x4, offset = 0x4, fixed_abs, tag = 'smem constant byte address 0x4 - core index']
  #allocation1 [shape = 'u32[144,128]{1,0:T(1,128)}', space=vmem, size = 0x12000, scoped, tag = 'internal scratch']
  %s0 = inlined_call_operand.hbm [shape: f32[128,128], index: 0, kind: input, shape index: {}]
  %s1 = inlined_call_operand.hbm [shape: f32[128,128], index: 1, kind: input, shape index: {}]
  %s2 = inlined_call_operand.hbm [shape: f32[128,128], index: 2, kind: input, shape index: {}]
  %s3 = inlined_call_operand.hbm [shape: f32[128,128], index: 3, kind: input, shape index: {}]
  %s4 = inlined_call_operand.hbm [shape: bf16[128,128], index: 4, kind: output, shape index: {0}]
  %s5 = inlined_call_operand.hbm [shape: f32[128,128], index: 5, kind: output, shape index: {1}]
  %s6 = inlined_call_operand.hbm [shape: f32[128,128], index: 6, kind: output, shape index: {2}]
  %7 = xla_tuple %s4, %s5, %s6
  %s8 = sld [smem:[#allocation0]]
  $region58: #{tpu_custom_call.1} parent=0
    _
  %s10 = ssub.s32 1, %s8
  %s11 = scalar_select 0, %s10, %s8
  $region1: #{tpu_custom_call.1} parent=0
    #allocation2 [shape = 'u8[65536]{0}', space=vmem, size = 0x10000, scoped, tag = 'input window, operand 0, single buffered']
    #allocation3 [shape = 's32[1]{0}', space=sflag, size = 0x4, scoped, tag = 'scoped memory for tpu_custom_call.1']
    #allocation4 [shape = 's32[1]{0}', space=sflag, size = 0x4, scoped, tag = 'scoped memory for tpu_custom_call.1']
    #allocation5 [shape = 'u8[65536]{0}', space=vmem, size = 0x10000, scoped, tag = 'input window, operand 1, single buffered']
    #allocation6 [shape = 's32[1]{0}', space=sflag, size = 0x4, scoped, tag = 'scoped memory for tpu_custom_call.1']
    #allocation7 [shape = 'u8[65536]{0}', space=vmem, size = 0x10000, scoped, tag = 'input window, operand 2, single buffered']
    #allocation8 [shape = 'u8[65536]{0}', space=vmem, size = 0x10000, scoped, tag = 'input window, operand 3, single buffered']
    #allocation9 [shape = 's32[1]{0}', space=sflag, size = 0x4, scoped, tag = 'scoped memory for tpu_custom_call.1']
    #allocation10 [shape = 'u8[32768]{0}', space=vmem, size = 0x8000, scoped, tag = 'output window, operand 0, single buffered']
    #allocation11 [shape = 'u8[65536]{0}', space=vmem, size = 0x10000, scoped, tag = 'output window, operand 1, single buffered']
    #allocation12 [shape = 's32[1]{0}', space=sflag, size = 0x4, scoped, tag = 'scoped memory for tpu_custom_call.1']
    #allocation13 [shape = 'u8[65536]{0}', space=vmem, size = 0x10000, scoped, tag = 'output window, operand 2, single buffered']
    %12 = vsyncpa [#allocation3], 0
    %13 = vsyncpa [#allocation6], 0
    %14 = vsyncpa [#allocation9], 0
    %15 = vsyncpa [#allocation4], 0
    %16 = vsyncpa [#allocation12], 0
    // Predicated region
    $region2: #{tpu_custom_call.1} parent=1 // pred_check
      _
    $region3: #{tpu_custom_call.1} parent=1 // pred_check_branch
      %18 = sbr.rel (0) target = $region5
    $region4: #{tpu_custom_call.1} parent=1 // pred_region
      %s20 = ssub.s32 2048, 2048
      %21 = vsyncadd [#allocation3], %s20
      %s22 = sshll.u32 [#allocation2], 4
      %s23 = int_to_ptr.vmem [resolvable:$true] %s22
      %28 = dma.hbm_to_vmem [thread:$0]  %s0, 2048, %s23, [#allocation3], 128, 128, 8
    $region5: #{tpu_custom_call.1} parent=1 // pred_fallthru
      _
    // Predicated region
    $region6: #{tpu_custom_call.1} parent=1 // pred_check
      _
    $region7: #{tpu_custom_call.1} parent=1 // pred_check_branch
      %30 = sbr.rel (0) target = $region9
    $region8: #{tpu_custom_call.1} parent=1 // pred_region
      %s32 = ssub.s32 2048, 2048
      %33 = vsyncadd [#allocation6], %s32
      %s34 = sshll.u32 [#allocation5], 4
      %s35 = int_to_ptr.vmem [resolvable:$true] %s34
      %40 = dma.hbm_to_vmem [thread:$0]  %s1, 2048, %s35, [#allocation6], 128, 128, 8
    $region9: #{tpu_custom_call.1} parent=1 // pred_fallthru
      _
    // Predicated region
    $region10: #{tpu_custom_call.1} parent=1 // pred_check
      _
    $region11: #{tpu_custom_call.1} parent=1 // pred_check_branch
      %42 = sbr.rel (0) target = $region13
    $region12: #{tpu_custom_call.1} parent=1 // pred_region
      %s44 = ssub.s32 2048, 2048
      %45 = vsyncadd [#allocation6], %s44
      %s46 = sshll.u32 [#allocation7], 4
      %s47 = int_to_ptr.vmem [resolvable:$true] %s46
      %52 = dma.hbm_to_vmem [thread:$0]  %s2, 2048, %s47, [#allocation6], 128, 128, 8
    $region13: #{tpu_custom_call.1} parent=1 // pred_fallthru
      _
    // Predicated region
    $region14: #{tpu_custom_call.1} parent=1 // pred_check
      _
    $region15: #{tpu_custom_call.1} parent=1 // pred_check_branch
      %54 = sbr.rel (0) target = $region17
    $region16: #{tpu_custom_call.1} parent=1 // pred_region
      %s56 = ssub.s32 2048, 2048
      %57 = vsyncadd [#allocation9], %s56
      %s58 = sshll.u32 [#allocation8], 4
      %s59 = int_to_ptr.vmem [resolvable:$true] %s58
      %64 = dma.hbm_to_vmem [thread:$0]  %s3, 2048, %s59, [#allocation9], 128, 128, 8
    $region17: #{tpu_custom_call.1} parent=1 // pred_fallthru
      _
    // Predicated region
    $region18: #{tpu_custom_call.1} parent=1 // pred_check
      _
    $region19: #{tpu_custom_call.1} parent=1 // pred_check_branch
      %66 = sbr.rel (0) target = $region21
    $region20: #{tpu_custom_call.1} parent=1 // pred_region
      %67 = dma.done [#allocation3], 2048
    $region21: #{tpu_custom_call.1} parent=1 // pred_fallthru
      _
    // Predicated region
    $region22: #{tpu_custom_call.1} parent=1 // pred_check
      _
    $region23: #{tpu_custom_call.1} parent=1 // pred_check_branch
      %69 = sbr.rel (0) target = $region25
    $region24: #{tpu_custom_call.1} parent=1 // pred_region
      %70 = dma.done [#allocation6], 2048
    $region25: #{tpu_custom_call.1} parent=1 // pred_fallthru
      _
    // Predicated region
    $region26: #{tpu_custom_call.1} parent=1 // pred_check
      _
    $region27: #{tpu_custom_call.1} parent=1 // pred_check_branch
      %72 = sbr.rel (0) target = $region29
    $region28: #{tpu_custom_call.1} parent=1 // pred_region
      %73 = dma.done [#allocation6], 2048
    $region29: #{tpu_custom_call.1} parent=1 // pred_fallthru
      _
    // Predicated region
    $region30: #{tpu_custom_call.1} parent=1 // pred_check
      _
    $region31: #{tpu_custom_call.1} parent=1 // pred_check_branch
      %75 = sbr.rel (0) target = $region33
    $region32: #{tpu_custom_call.1} parent=1 // pred_region
      %76 = dma.done [#allocation9], 2048
    $region33: #{tpu_custom_call.1} parent=1 // pred_fallthru
      _
    %v77 = vld [vmem:[#allocation2] sm:$0xff]
    %v78 = vld [vmem:[#allocation2 + $0x8] sm:$0xff]
    %v79 = vld [vmem:[#allocation2 + $0x10] sm:$0xff]
    %v80 = vld [vmem:[#allocation2 + $0x18] sm:$0xff]
    %v81 = vld [vmem:[#allocation2 + $0x20] sm:$0xff]
    %v82 = vld [vmem:[#allocation2 + $0x28] sm:$0xff]
    %v83 = vld [vmem:[#allocation2 + $0x30] sm:$0xff]
    %v84 = vld [vmem:[#allocation2 + $0x38] sm:$0xff]
    %v85 = vld [vmem:[#allocation2 + $0x40] sm:$0xff]
    %v86 = vld [vmem:[#allocation2 + $0x48] sm:$0xff]
    %v87 = vld [vmem:[#allocation2 + $0x50] sm:$0xff]
    %v88 = vld [vmem:[#allocation2 + $0x58] sm:$0xff]
    %v89 = vld [vmem:[#allocation2 + $0x60] sm:$0xff]
    %v90 = vld [vmem:[#allocation2 + $0x68] sm:$0xff]
    %v91 = vld [vmem:[#allocation2 + $0x70] sm:$0xff]
    %v92 = vld [vmem:[#allocation2 + $0x78] sm:$0xff]
    %v93 = vld [vmem:[#allocation5] sm:$0xff]
    %v94 = vld [vmem:[#allocation5 + $0x8] sm:$0xff]
    %v95 = vld [vmem:[#allocation5 + $0x10] sm:$0xff]
    %v96 = vld [vmem:[#allocation5 + $0x18] sm:$0xff]
    %v97 = vld [vmem:[#allocation5 + $0x20] sm:$0xff]
    %v98 = vld [vmem:[#allocation5 + $0x28] sm:$0xff]
    %v99 = vld [vmem:[#allocation5 + $0x30] sm:$0xff]
    %v100 = vld [vmem:[#allocation5 + $0x38] sm:$0xff]
    %v101 = vld [vmem:[#allocation5 + $0x40] sm:$0xff]
    %v102 = vld [vmem:[#allocation5 + $0x48] sm:$0xff]
    %v103 = vld [vmem:[#allocation5 + $0x50] sm:$0xff]
    %v104 = vld [vmem:[#allocation5 + $0x58] sm:$0xff]
    %v105 = vld [vmem:[#allocation5 + $0x60] sm:$0xff]
    %v106 = vld [vmem:[#allocation5 + $0x68] sm:$0xff]
    %v107 = vld [vmem:[#allocation5 + $0x70] sm:$0xff]
    %v108 = vld [vmem:[#allocation5 + $0x78] sm:$0xff]
    %109 = vmatprep.subr.mxu0 0.0
    %110 = vmatpush1.msra.mxu0 %v108
    %111 = vmatprep.subr.mxu0 0.0
    %112 = vmatpush1.msra.mxu0 %v107
    %113 = vmatprep.subr.mxu0 0.0
    %114 = vmatpush1.msra.mxu0 %v106
    %115 = vmatprep.subr.mxu0 0.0
    %116 = vmatpush1.msra.mxu0 %v105
    %117 = vmatprep.subr.mxu0 0.0
    %118 = vmatpush1.msra.mxu0 %v104
    %119 = vmatprep.subr.mxu0 0.0
    %120 = vmatpush1.msra.mxu0 %v103
    %121 = vmatprep.subr.mxu0 0.0
    %122 = vmatpush1.msra.mxu0 %v102
    %123 = vmatprep.subr.mxu0 0.0
    %124 = vmatpush1.msra.mxu0 %v101
    %125 = vmatprep.subr.mxu0 0.0
    %126 = vmatpush1.msra.mxu0 %v100
    %127 = vmatprep.subr.mxu0 0.0
    %128 = vmatpush1.msra.mxu0 %v99
    %129 = vmatprep.subr.mxu0 0.0
    %130 = vmatpush1.msra.mxu0 %v98
    %131 = vmatprep.subr.mxu0 0.0
    %132 = vmatpush1.msra.mxu0 %v97
    %133 = vmatprep.subr.mxu0 0.0
    %134 = vmatpush1.msra.mxu0 %v96
    %135 = vmatprep.subr.mxu0 0.0
    %136 = vmatpush1.msra.mxu0 %v95
    %137 = vmatprep.subr.mxu0 0.0
    %138 = vmatpush1.msra.mxu0 %v94
    %139 = vmatprep.subr.mxu0 0.0
    %140 = vmatpush1.msra.mxu0 %v93
    %141 = vmatprep.subr.mxu0 0.0
    %142 = vmatpush2.msra.mxu0 0.0
    %143 = vmatprep.subr.mxu0 0.0
    %144 = vmatpush2.msra.mxu0 0.0
    %145 = vmatprep.subr.mxu0 0.0
    %146 = vmatpush2.msra.mxu0 0.0
    %147 = vmatprep.subr.mxu0 0.0
    %148 = vmatpush2.msra.mxu0 0.0
    %149 = vmatprep.subr.mxu0 0.0
    %150 = vmatpush2.msra.mxu0 0.0
    %151 = vmatprep.subr.mxu0 0.0
    %152 = vmatpush2.msra.mxu0 0.0
    %153 = vmatprep.subr.mxu0 0.0
    %154 = vmatpush2.msra.mxu0 0.0
    %155 = vmatprep.subr.mxu0 0.0
    %156 = vmatpush2.msra.mxu0 0.0
    %157 = vmatprep.subr.mxu0 0.0
    %158 = vmatpush2.msra.mxu0 0.0
    %159 = vmatprep.subr.mxu0 0.0
    %160 = vmatpush2.msra.mxu0 0.0
    %161 = vmatprep.subr.mxu0 0.0
    %162 = vmatpush2.msra.mxu0 0.0
    %163 = vmatprep.subr.mxu0 0.0
    %164 = vmatpush2.msra.mxu0 0.0
    %165 = vmatprep.subr.mxu0 0.0
    %166 = vmatpush2.msra.mxu0 0.0
    %167 = vmatprep.subr.mxu0 0.0
    %168 = vmatpush2.msra.mxu0 0.0
    %169 = vmatprep.subr.mxu0 0.0
    %170 = vmatpush2.msra.mxu0 0.0
    %171 = vmatprep.subr.mxu0 0.0
    %172 = vmatpush2.msra.mxu0 0.0
    %173 = vmatprep.mubr.f32.mxu0 0.0
    %174 = vmatmul.mubr.f32.gmra.mxu0 %v77
    %v175 = vpop.f32.mrf.mxu0
    %v176 = vadd.f32 0.0, %v175
    %v177 = vpop.f32.mrf.mxu0
    %178 = vmatprep.mubr.f32.mxu0 0.0
    %179 = vmatmul.mubr.f32.gmra.mxu0 %v78
    %v180 = vpop.f32.mrf.mxu0
    %v181 = vadd.f32 0.0, %v180
    %v182 = vpop.f32.mrf.mxu0
    %183 = vmatprep.mubr.f32.mxu0 0.0
    %184 = vmatmul.mubr.f32.gmra.mxu0 %v79
    %v185 = vpop.f32.mrf.mxu0
    %v186 = vadd.f32 0.0, %v185
    %v187 = vpop.f32.mrf.mxu0
    %188 = vmatprep.mubr.f32.mxu0 0.0
    %189 = vmatmul.mubr.f32.gmra.mxu0 %v80
    %v190 = vpop.f32.mrf.mxu0
    %v191 = vadd.f32 0.0, %v190
    %v192 = vpop.f32.mrf.mxu0
    %193 = vmatprep.mubr.f32.mxu0 0.0
    %194 = vmatmul.mubr.f32.gmra.mxu0 %v81
    %v195 = vpop.f32.mrf.mxu0
    %v196 = vadd.f32 0.0, %v195
    %v197 = vpop.f32.mrf.mxu0
    %198 = vmatprep.mubr.f32.mxu0 0.0
    %199 = vmatmul.mubr.f32.gmra.mxu0 %v82
    %v200 = vpop.f32.mrf.mxu0
    %v201 = vadd.f32 0.0, %v200
    %v202 = vpop.f32.mrf.mxu0
    %203 = vmatprep.mubr.f32.mxu0 0.0
    %204 = vmatmul.mubr.f32.gmra.mxu0 %v83
    %v205 = vpop.f32.mrf.mxu0
    %v206 = vadd.f32 0.0, %v205
    %v207 = vpop.f32.mrf.mxu0
    %208 = vmatprep.mubr.f32.mxu0 0.0
    %209 = vmatmul.mubr.f32.gmra.mxu0 %v84
    %v210 = vpop.f32.mrf.mxu0
    %v211 = vadd.f32 0.0, %v210
    %v212 = vpop.f32.mrf.mxu0
    %213 = vmatprep.mubr.f32.mxu0 0.0
    %214 = vmatmul.mubr.f32.gmra.mxu0 %v85
    %v215 = vpop.f32.mrf.mxu0
    %v216 = vadd.f32 0.0, %v215
    %v217 = vpop.f32.mrf.mxu0
    %218 = vmatprep.mubr.f32.mxu0 0.0
    %219 = vmatmul.mubr.f32.gmra.mxu0 %v86
    %v220 = vpop.f32.mrf.mxu0
    %v221 = vadd.f32 0.0, %v220
    %v222 = vpop.f32.mrf.mxu0
    %223 = vmatprep.mubr.f32.mxu0 0.0
    %224 = vmatmul.mubr.f32.gmra.mxu0 %v87
    %v225 = vpop.f32.mrf.mxu0
    %v226 = vadd.f32 0.0, %v225
    %v227 = vpop.f32.mrf.mxu0
    %228 = vmatprep.mubr.f32.mxu0 0.0
    %229 = vmatmul.mubr.f32.gmra.mxu0 %v88
    %v230 = vpop.f32.mrf.mxu0
    %v231 = vadd.f32 0.0, %v230
    %v232 = vpop.f32.mrf.mxu0
    %233 = vmatprep.mubr.f32.mxu0 0.0
    %234 = vmatmul.mubr.f32.gmra.mxu0 %v89
    %v235 = vpop.f32.mrf.mxu0
    %v236 = vadd.f32 0.0, %v235
    %v237 = vpop.f32.mrf.mxu0
    %238 = vmatprep.mubr.f32.mxu0 0.0
    %239 = vmatmul.mubr.f32.gmra.mxu0 %v90
    %v240 = vpop.f32.mrf.mxu0
    %v241 = vadd.f32 0.0, %v240
    %v242 = vpop.f32.mrf.mxu0
    %243 = vmatprep.mubr.f32.mxu0 0.0
    %244 = vmatmul.mubr.f32.gmra.mxu0 %v91
    %v245 = vpop.f32.mrf.mxu0
    %v246 = vadd.f32 0.0, %v245
    %v247 = vpop.f32.mrf.mxu0
    %248 = vmatprep.mubr.f32.mxu0 0.0
    %249 = vmatmul.mubr.f32.gmra.mxu0 %v92
    %v250 = vpop.f32.mrf.mxu0
    %v251 = vadd.f32 0.0, %v250
    %v252 = vpop.f32.mrf.mxu0
    %253 = vdwg.mxu0
    %v254 = vpack.c.bf16 %v181, %v176
    %v255 = vpack.c.bf16 %v191, %v186
    %v256 = vpack.c.bf16 %v201, %v196
    %v257 = vpack.c.bf16 %v211, %v206
    %v258 = vpack.c.bf16 %v221, %v216
    %v259 = vpack.c.bf16 %v231, %v226
    %v260 = vpack.c.bf16 %v241, %v236
    %v261 = vpack.c.bf16 %v251, %v246
    %v270 = vunpack.c.l.b16 %v254
    %v271 = vunpack.c.h.b16 %v254
    %v272 = vunpack.c.l.b16 %v255
    %v273 = vunpack.c.h.b16 %v255
    %v274 = vunpack.c.l.b16 %v256
    %v275 = vunpack.c.h.b16 %v256
    %v276 = vunpack.c.l.b16 %v257
    %v277 = vunpack.c.h.b16 %v257
    %v278 = vunpack.c.l.b16 %v258
    %v279 = vunpack.c.h.b16 %v258
    %v280 = vunpack.c.l.b16 %v259
    %v281 = vunpack.c.h.b16 %v259
    %v282 = vunpack.c.l.b16 %v260
    %v283 = vunpack.c.h.b16 %v260
    %v284 = vunpack.c.l.b16 %v261
    %v285 = vunpack.c.h.b16 %v261
    %v286 = vpack.c.b16 %v270, %v270
    %v287 = vpack.c.b16 %v271, %v271
    %v288 = vpack.c.b16 %v272, %v272
    %v289 = vpack.c.b16 %v273, %v273
    %v290 = vpack.c.b16 %v274, %v274
    %v291 = vpack.c.b16 %v275, %v275
    %v292 = vpack.c.b16 %v276, %v276
    %v293 = vpack.c.b16 %v277, %v277
    %v294 = vpack.c.b16 %v278, %v278
    %v295 = vpack.c.b16 %v279, %v279
    %v296 = vpack.c.b16 %v280, %v280
    %v297 = vpack.c.b16 %v281, %v281
    %v298 = vpack.c.b16 %v282, %v282
    %v299 = vpack.c.b16 %v283, %v283
    %v300 = vpack.c.b16 %v284, %v284
    %v301 = vpack.c.b16 %v285, %v285
    %318 = vst [vmem:[#allocation10] sm:$0xf] %v286
    %319 = vst [vmem:[#allocation10 + $0x4] sm:$0xf] %v287
    %320 = vst [vmem:[#allocation10 + $0x8] sm:$0xf] %v288
    %321 = vst [vmem:[#allocation10 + $0xc] sm:$0xf] %v289
    %322 = vst [vmem:[#allocation10 + $0x10] sm:$0xf] %v290
    %323 = vst [vmem:[#allocation10 + $0x14] sm:$0xf] %v291
    %324 = vst [vmem:[#allocation10 + $0x18] sm:$0xf] %v292
    %325 = vst [vmem:[#allocation10 + $0x1c] sm:$0xf] %v293
    %326 = vst [vmem:[#allocation10 + $0x20] sm:$0xf] %v294
    %327 = vst [vmem:[#allocation10 + $0x24] sm:$0xf] %v295
    %328 = vst [vmem:[#allocation10 + $0x28] sm:$0xf] %v296
    %329 = vst [vmem:[#allocation10 + $0x2c] sm:$0xf] %v297
    %330 = vst [vmem:[#allocation10 + $0x30] sm:$0xf] %v298
    %331 = vst [vmem:[#allocation10 + $0x34] sm:$0xf] %v299
    %332 = vst [vmem:[#allocation10 + $0x38] sm:$0xf] %v300
    %333 = vst [vmem:[#allocation10 + $0x3c] sm:$0xf] %v301
    %v334 = vld [vmem:[#allocation7] sm:$0xff]
    %v335 = vld [vmem:[#allocation7 + $0x8] sm:$0xff]
    %v336 = vld [vmem:[#allocation7 + $0x10] sm:$0xff]
    %v337 = vld [vmem:[#allocation7 + $0x18] sm:$0xff]
    %v338 = vld [vmem:[#allocation7 + $0x20] sm:$0xff]
    %v339 = vld [vmem:[#allocation7 + $0x28] sm:$0xff]
    %v340 = vld [vmem:[#allocation7 + $0x30] sm:$0xff]
    %v341 = vld [vmem:[#allocation7 + $0x38] sm:$0xff]
    %v342 = vld [vmem:[#allocation7 + $0x40] sm:$0xff]
    %v343 = vld [vmem:[#allocation7 + $0x48] sm:$0xff]
    %v344 = vld [vmem:[#allocation7 + $0x50] sm:$0xff]
    %v345 = vld [vmem:[#allocation7 + $0x58] sm:$0xff]
    %v346 = vld [vmem:[#allocation7 + $0x60] sm:$0xff]
    %v347 = vld [vmem:[#allocation7 + $0x68] sm:$0xff]
    %v348 = vld [vmem:[#allocation7 + $0x70] sm:$0xff]
    %v349 = vld [vmem:[#allocation7 + $0x78] sm:$0xff]
    %350 = vmatprep.subr.mxu0 0.0
    %351 = vmatpush1.msra.mxu0 %v349
    %352 = vmatprep.subr.mxu0 0.0
    %353 = vmatpush1.msra.mxu0 %v348
    %354 = vmatprep.subr.mxu0 0.0
    %355 = vmatpush1.msra.mxu0 %v347
    %356 = vmatprep.subr.mxu0 0.0
    %357 = vmatpush1.msra.mxu0 %v346
    %358 = vmatprep.subr.mxu0 0.0
    %359 = vmatpush1.msra.mxu0 %v345
    %360 = vmatprep.subr.mxu0 0.0
    %361 = vmatpush1.msra.mxu0 %v344
    %362 = vmatprep.subr.mxu0 0.0
    %363 = vmatpush1.msra.mxu0 %v343
    %364 = vmatprep.subr.mxu0 0.0
    %365 = vmatpush1.msra.mxu0 %v342
    %366 = vmatprep.subr.mxu0 0.0
    %367 = vmatpush1.msra.mxu0 %v341
    %368 = vmatprep.subr.mxu0 0.0
    %369 = vmatpush1.msra.mxu0 %v340
    %370 = vmatprep.subr.mxu0 0.0
    %371 = vmatpush1.msra.mxu0 %v339
    %372 = vmatprep.subr.mxu0 0.0
    %373 = vmatpush1.msra.mxu0 %v338
    %374 = vmatprep.subr.mxu0 0.0
    %375 = vmatpush1.msra.mxu0 %v337
    %376 = vmatprep.subr.mxu0 0.0
    %377 = vmatpush1.msra.mxu0 %v336
    %378 = vmatprep.subr.mxu0 0.0
    %379 = vmatpush1.msra.mxu0 %v335
    %380 = vmatprep.subr.mxu0 0.0
    %381 = vmatpush1.msra.mxu0 %v334
    %382 = vmatprep.subr.mxu0 0.0
    %383 = vmatpush2.msra.mxu0 0.0
    %384 = vmatprep.subr.mxu0 0.0
    %385 = vmatpush2.msra.mxu0 0.0
    %386 = vmatprep.subr.mxu0 0.0
    %387 = vmatpush2.msra.mxu0 0.0
    %388 = vmatprep.subr.mxu0 0.0
    %389 = vmatpush2.msra.mxu0 0.0
    %390 = vmatprep.subr.mxu0 0.0
    %391 = vmatpush2.msra.mxu0 0.0
    %392 = vmatprep.subr.mxu0 0.0
    %393 = vmatpush2.msra.mxu0 0.0
    %394 = vmatprep.subr.mxu0 0.0
    %395 = vmatpush2.msra.mxu0 0.0
    %396 = vmatprep.subr.mxu0 0.0
    %397 = vmatpush2.msra.mxu0 0.0
    %398 = vmatprep.subr.mxu0 0.0
    %399 = vmatpush2.msra.mxu0 0.0
    %400 = vmatprep.subr.mxu0 0.0
    %401 = vmatpush2.msra.mxu0 0.0
    %402 = vmatprep.subr.mxu0 0.0
    %403 = vmatpush2.msra.mxu0 0.0
    %404 = vmatprep.subr.mxu0 0.0
    %405 = vmatpush2.msra.mxu0 0.0
    %406 = vmatprep.subr.mxu0 0.0
    %407 = vmatpush2.msra.mxu0 0.0
    %408 = vmatprep.subr.mxu0 0.0
    %409 = vmatpush2.msra.mxu0 0.0
    %410 = vmatprep.subr.mxu0 0.0
    %411 = vmatpush2.msra.mxu0 0.0
    %412 = vmatprep.subr.mxu0 0.0
    %413 = vmatpush2.msra.mxu0 0.0
    %414 = vmatprep.mubr.f32.mxu0 0.0
    %415 = vmatmul.mubr.f32.gmra.mxu0 %v176
    %v416 = vpop.f32.mrf.mxu0
    %v417 = vadd.f32 0.0, %v416
    %v418 = vpop.f32.mrf.mxu0
    %419 = vmatprep.mubr.f32.mxu0 0.0
    %420 = vmatmul.mubr.f32.gmra.mxu0 %v181
    %v421 = vpop.f32.mrf.mxu0
    %v422 = vadd.f32 0.0, %v421
    %v423 = vpop.f32.mrf.mxu0
    %424 = vmatprep.mubr.f32.mxu0 0.0
    %425 = vmatmul.mubr.f32.gmra.mxu0 %v186
    %v426 = vpop.f32.mrf.mxu0
    %v427 = vadd.f32 0.0, %v426
    %v428 = vpop.f32.mrf.mxu0
    %429 = vmatprep.mubr.f32.mxu0 0.0
    %430 = vmatmul.mubr.f32.gmra.mxu0 %v191
    %v431 = vpop.f32.mrf.mxu0
    %v432 = vadd.f32 0.0, %v431
    %v433 = vpop.f32.mrf.mxu0
    %434 = vmatprep.mubr.f32.mxu0 0.0
    %435 = vmatmul.mubr.f32.gmra.mxu0 %v196
    %v436 = vpop.f32.mrf.mxu0
    %v437 = vadd.f32 0.0, %v436
    %v438 = vpop.f32.mrf.mxu0
    %439 = vmatprep.mubr.f32.mxu0 0.0
    %440 = vmatmul.mubr.f32.gmra.mxu0 %v201
    %v441 = vpop.f32.mrf.mxu0
    %v442 = vadd.f32 0.0, %v441
    %v443 = vpop.f32.mrf.mxu0
    %444 = vmatprep.mubr.f32.mxu0 0.0
    %445 = vmatmul.mubr.f32.gmra.mxu0 %v206
    %v446 = vpop.f32.mrf.mxu0
    %v447 = vadd.f32 0.0, %v446
    %v448 = vpop.f32.mrf.mxu0
    %449 = vmatprep.mubr.f32.mxu0 0.0
    %450 = vmatmul.mubr.f32.gmra.mxu0 %v211
    %v451 = vpop.f32.mrf.mxu0
    %v452 = vadd.f32 0.0, %v451
    %v453 = vpop.f32.mrf.mxu0
    %454 = vmatprep.mubr.f32.mxu0 0.0
    %455 = vmatmul.mubr.f32.gmra.mxu0 %v216
    %v456 = vpop.f32.mrf.mxu0
    %v457 = vadd.f32 0.0, %v456
    %v458 = vpop.f32.mrf.mxu0
    %459 = vmatprep.mubr.f32.mxu0 0.0
    %460 = vmatmul.mubr.f32.gmra.mxu0 %v221
    %v461 = vpop.f32.mrf.mxu0
    %v462 = vadd.f32 0.0, %v461
    %v463 = vpop.f32.mrf.mxu0
    %464 = vmatprep.mubr.f32.mxu0 0.0
    %465 = vmatmul.mubr.f32.gmra.mxu0 %v226
    %v466 = vpop.f32.mrf.mxu0
    %v467 = vadd.f32 0.0, %v466
    %v468 = vpop.f32.mrf.mxu0
    %469 = vmatprep.mubr.f32.mxu0 0.0
    %470 = vmatmul.mubr.f32.gmra.mxu0 %v231
    %v471 = vpop.f32.mrf.mxu0
    %v472 = vadd.f32 0.0, %v471
    %v473 = vpop.f32.mrf.mxu0
    %474 = vmatprep.mubr.f32.mxu0 0.0
    %475 = vmatmul.mubr.f32.gmra.mxu0 %v236
    %v476 = vpop.f32.mrf.mxu0
    %v477 = vadd.f32 0.0, %v476
    %v478 = vpop.f32.mrf.mxu0
    %479 = vmatprep.mubr.f32.mxu0 0.0
    %480 = vmatmul.mubr.f32.gmra.mxu0 %v241
    %v481 = vpop.f32.mrf.mxu0
    %v482 = vadd.f32 0.0, %v481
    %v483 = vpop.f32.mrf.mxu0
    %484 = vmatprep.mubr.f32.mxu0 0.0
    %485 = vmatmul.mubr.f32.gmra.mxu0 %v246
    %v486 = vpop.f32.mrf.mxu0
    %v487 = vadd.f32 0.0, %v486
    %v488 = vpop.f32.mrf.mxu0
    %489 = vmatprep.mubr.f32.mxu0 0.0
    %490 = vmatmul.mubr.f32.gmra.mxu0 %v251
    %v491 = vpop.f32.mrf.mxu0
    %v492 = vadd.f32 0.0, %v491
    %v493 = vpop.f32.mrf.mxu0
    %494 = vdwg.mxu0
    %495 = vst [vmem:[#allocation11] sm:$0xff] %v417
    %496 = vst [vmem:[#allocation11 + $0x8] sm:$0xff] %v422
    %497 = vst [vmem:[#allocation11 + $0x10] sm:$0xff] %v427
    %498 = vst [vmem:[#allocation11 + $0x18] sm:$0xff] %v432
    %499 = vst [vmem:[#allocation11 + $0x20] sm:$0xff] %v437
    %500 = vst [vmem:[#allocation11 + $0x28] sm:$0xff] %v442
    %501 = vst [vmem:[#allocation11 + $0x30] sm:$0xff] %v447
    %502 = vst [vmem:[#allocation11 + $0x38] sm:$0xff] %v452
    %503 = vst [vmem:[#allocation11 + $0x40] sm:$0xff] %v457
    %504 = vst [vmem:[#allocation11 + $0x48] sm:$0xff] %v462
    %505 = vst [vmem:[#allocation11 + $0x50] sm:$0xff] %v467
    %506 = vst [vmem:[#allocation11 + $0x58] sm:$0xff] %v472
    %507 = vst [vmem:[#allocation11 + $0x60] sm:$0xff] %v477
    %508 = vst [vmem:[#allocation11 + $0x68] sm:$0xff] %v482
    %509 = vst [vmem:[#allocation11 + $0x70] sm:$0xff] %v487
    %510 = vst [vmem:[#allocation11 + $0x78] sm:$0xff] %v492
    %v511 = vld [vmem:[#allocation8] sm:$0xff]
    %v512 = vld [vmem:[#allocation8 + $0x8] sm:$0xff]
    %v513 = vld [vmem:[#allocation8 + $0x10] sm:$0xff]
    %v514 = vld [vmem:[#allocation8 + $0x18] sm:$0xff]
    %v515 = vld [vmem:[#allocation8 + $0x20] sm:$0xff]
    %v516 = vld [vmem:[#allocation8 + $0x28] sm:$0xff]
    %v517 = vld [vmem:[#allocation8 + $0x30] sm:$0xff]
    %v518 = vld [vmem:[#allocation8 + $0x38] sm:$0xff]
    %v519 = vld [vmem:[#allocation8 + $0x40] sm:$0xff]
    %v520 = vld [vmem:[#allocation8 + $0x48] sm:$0xff]
    %v521 = vld [vmem:[#allocation8 + $0x50] sm:$0xff]
    %v522 = vld [vmem:[#allocation8 + $0x58] sm:$0xff]
    %v523 = vld [vmem:[#allocation8 + $0x60] sm:$0xff]
    %v524 = vld [vmem:[#allocation8 + $0x68] sm:$0xff]
    %v525 = vld [vmem:[#allocation8 + $0x70] sm:$0xff]
    %v526 = vld [vmem:[#allocation8 + $0x78] sm:$0xff]
    %527 = vmatprep.subr.mxu0 0.0
    %528 = vmatpush1.msra.mxu0 %v526
    %529 = vmatprep.subr.mxu0 0.0
    %530 = vmatpush1.msra.mxu0 %v525
    %531 = vmatprep.subr.mxu0 0.0
    %532 = vmatpush1.msra.mxu0 %v524
    %533 = vmatprep.subr.mxu0 0.0
    %534 = vmatpush1.msra.mxu0 %v523
    %535 = vmatprep.subr.mxu0 0.0
    %536 = vmatpush1.msra.mxu0 %v522
    %537 = vmatprep.subr.mxu0 0.0
    %538 = vmatpush1.msra.mxu0 %v521
    %539 = vmatprep.subr.mxu0 0.0
    %540 = vmatpush1.msra.mxu0 %v520
    %541 = vmatprep.subr.mxu0 0.0
    %542 = vmatpush1.msra.mxu0 %v519
    %543 = vmatprep.subr.mxu0 0.0
    %544 = vmatpush1.msra.mxu0 %v518
    %545 = vmatprep.subr.mxu0 0.0
    %546 = vmatpush1.msra.mxu0 %v517
    %547 = vmatprep.subr.mxu0 0.0
    %548 = vmatpush1.msra.mxu0 %v516
    %549 = vmatprep.subr.mxu0 0.0
    %550 = vmatpush1.msra.mxu0 %v515
    %551 = vmatprep.subr.mxu0 0.0
    %552 = vmatpush1.msra.mxu0 %v514
    %553 = vmatprep.subr.mxu0 0.0
    %554 = vmatpush1.msra.mxu0 %v513
    %555 = vmatprep.subr.mxu0 0.0
    %556 = vmatpush1.msra.mxu0 %v512
    %557 = vmatprep.subr.mxu0 0.0
    %558 = vmatpush1.msra.mxu0 %v511
    %559 = vmatprep.subr.mxu0 0.0
    %560 = vmatpush2.msra.mxu0 0.0
    %561 = vmatprep.subr.mxu0 0.0
    %562 = vmatpush2.msra.mxu0 0.0
    %563 = vmatprep.subr.mxu0 0.0
    %564 = vmatpush2.msra.mxu0 0.0
    %565 = vmatprep.subr.mxu0 0.0
    %566 = vmatpush2.msra.mxu0 0.0
    %567 = vmatprep.subr.mxu0 0.0
    %568 = vmatpush2.msra.mxu0 0.0
    %569 = vmatprep.subr.mxu0 0.0
    %570 = vmatpush2.msra.mxu0 0.0
    %571 = vmatprep.subr.mxu0 0.0
    %572 = vmatpush2.msra.mxu0 0.0
    %573 = vmatprep.subr.mxu0 0.0
    %574 = vmatpush2.msra.mxu0 0.0
    %575 = vmatprep.subr.mxu0 0.0
    %576 = vmatpush2.msra.mxu0 0.0
    %577 = vmatprep.subr.mxu0 0.0
    %578 = vmatpush2.msra.mxu0 0.0
    %579 = vmatprep.subr.mxu0 0.0
    %580 = vmatpush2.msra.mxu0 0.0
    %581 = vmatprep.subr.mxu0 0.0
    %582 = vmatpush2.msra.mxu0 0.0
    %583 = vmatprep.subr.mxu0 0.0
    %584 = vmatpush2.msra.mxu0 0.0
    %585 = vmatprep.subr.mxu0 0.0
    %586 = vmatpush2.msra.mxu0 0.0
    %587 = vmatprep.subr.mxu0 0.0
    %588 = vmatpush2.msra.mxu0 0.0
    %589 = vmatprep.subr.mxu0 0.0
    %590 = vmatpush2.msra.mxu0 0.0
    %591 = vmatprep.mubr.f32.mxu0 0.0
    %592 = vmatmul.mubr.f32.gmra.mxu0 %v176
    %v593 = vpop.f32.mrf.mxu0
    %v594 = vadd.f32 0.0, %v593
    %v595 = vpop.f32.mrf.mxu0
    %596 = vmatprep.mubr.f32.mxu0 0.0
    %597 = vmatmul.mubr.f32.gmra.mxu0 %v181
    %v598 = vpop.f32.mrf.mxu0
    %v599 = vadd.f32 0.0, %v598
    %v600 = vpop.f32.mrf.mxu0
    %601 = vmatprep.mubr.f32.mxu0 0.0
    %602 = vmatmul.mubr.f32.gmra.mxu0 %v186
    %v603 = vpop.f32.mrf.mxu0
    %v604 = vadd.f32 0.0, %v603
    %v605 = vpop.f32.mrf.mxu0
    %606 = vmatprep.mubr.f32.mxu0 0.0
    %607 = vmatmul.mubr.f32.gmra.mxu0 %v191
    %v608 = vpop.f32.mrf.mxu0
    %v609 = vadd.f32 0.0, %v608
    %v610 = vpop.f32.mrf.mxu0
    %611 = vmatprep.mubr.f32.mxu0 0.0
    %612 = vmatmul.mubr.f32.gmra.mxu0 %v196
    %v613 = vpop.f32.mrf.mxu0
    %v614 = vadd.f32 0.0, %v613
    %v615 = vpop.f32.mrf.mxu0
    %616 = vmatprep.mubr.f32.mxu0 0.0
    %617 = vmatmul.mubr.f32.gmra.mxu0 %v201
    %v618 = vpop.f32.mrf.mxu0
    %v619 = vadd.f32 0.0, %v618
    %v620 = vpop.f32.mrf.mxu0
    %621 = vmatprep.mubr.f32.mxu0 0.0
    %622 = vmatmul.mubr.f32.gmra.mxu0 %v206
    %v623 = vpop.f32.mrf.mxu0
    %v624 = vadd.f32 0.0, %v623
    %v625 = vpop.f32.mrf.mxu0
    %626 = vmatprep.mubr.f32.mxu0 0.0
    %627 = vmatmul.mubr.f32.gmra.mxu0 %v211
    %v628 = vpop.f32.mrf.mxu0
    %v629 = vadd.f32 0.0, %v628
    %v630 = vpop.f32.mrf.mxu0
    %631 = vmatprep.mubr.f32.mxu0 0.0
    %632 = vmatmul.mubr.f32.gmra.mxu0 %v216
    %v633 = vpop.f32.mrf.mxu0
    %v634 = vadd.f32 0.0, %v633
    %v635 = vpop.f32.mrf.mxu0
    %636 = vmatprep.mubr.f32.mxu0 0.0
    %637 = vmatmul.mubr.f32.gmra.mxu0 %v221
    %v638 = vpop.f32.mrf.mxu0
    %v639 = vadd.f32 0.0, %v638
    %v640 = vpop.f32.mrf.mxu0
    %641 = vmatprep.mubr.f32.mxu0 0.0
    %642 = vmatmul.mubr.f32.gmra.mxu0 %v226
    %v643 = vpop.f32.mrf.mxu0
    %v644 = vadd.f32 0.0, %v643
    %v645 = vpop.f32.mrf.mxu0
    %646 = vmatprep.mubr.f32.mxu0 0.0
    %647 = vmatmul.mubr.f32.gmra.mxu0 %v231
    %v648 = vpop.f32.mrf.mxu0
    %v649 = vadd.f32 0.0, %v648
    %v650 = vpop.f32.mrf.mxu0
    %651 = vmatprep.mubr.f32.mxu0 0.0
    %652 = vmatmul.mubr.f32.gmra.mxu0 %v236
    %v653 = vpop.f32.mrf.mxu0
    %v654 = vadd.f32 0.0, %v653
    %v655 = vpop.f32.mrf.mxu0
    %656 = vmatprep.mubr.f32.mxu0 0.0
    %657 = vmatmul.mubr.f32.gmra.mxu0 %v241
    %v658 = vpop.f32.mrf.mxu0
    %v659 = vadd.f32 0.0, %v658
    %v660 = vpop.f32.mrf.mxu0
    %661 = vmatprep.mubr.f32.mxu0 0.0
    %662 = vmatmul.mubr.f32.gmra.mxu0 %v246
    %v663 = vpop.f32.mrf.mxu0
    %v664 = vadd.f32 0.0, %v663
    %v665 = vpop.f32.mrf.mxu0
    %666 = vmatprep.mubr.f32.mxu0 0.0
    %667 = vmatmul.mubr.f32.gmra.mxu0 %v251
    %v668 = vpop.f32.mrf.mxu0
    %v669 = vadd.f32 0.0, %v668
    %v670 = vpop.f32.mrf.mxu0
    %671 = vdwg.mxu0
    %672 = vst [vmem:[#allocation13] sm:$0xff] %v594
    %673 = vst [vmem:[#allocation13 + $0x8] sm:$0xff] %v599
    %674 = vst [vmem:[#allocation13 + $0x10] sm:$0xff] %v604
    %675 = vst [vmem:[#allocation13 + $0x18] sm:$0xff] %v609
    %676 = vst [vmem:[#allocation13 + $0x20] sm:$0xff] %v614
    %677 = vst [vmem:[#allocation13 + $0x28] sm:$0xff] %v619
    %678 = vst [vmem:[#allocation13 + $0x30] sm:$0xff] %v624
    %679 = vst [vmem:[#allocation13 + $0x38] sm:$0xff] %v629
    %680 = vst [vmem:[#allocation13 + $0x40] sm:$0xff] %v634
    %681 = vst [vmem:[#allocation13 + $0x48] sm:$0xff] %v639
    %682 = vst [vmem:[#allocation13 + $0x50] sm:$0xff] %v644
    %683 = vst [vmem:[#allocation13 + $0x58] sm:$0xff] %v649
    %684 = vst [vmem:[#allocation13 + $0x60] sm:$0xff] %v654
    %685 = vst [vmem:[#allocation13 + $0x68] sm:$0xff] %v659
    %686 = vst [vmem:[#allocation13 + $0x70] sm:$0xff] %v664
    %687 = vst [vmem:[#allocation13 + $0x78] sm:$0xff] %v669
    // Predicated region
    $region34: #{tpu_custom_call.1} parent=1 // pred_check
      _
    $region35: #{tpu_custom_call.1} parent=1 // pred_check_branch
      %689 = sbr.rel (0) target = $region37
    $region36: #{tpu_custom_call.1} parent=1 // pred_region
      %s691 = ssub.s32 1024, 1024
      %692 = vsyncadd [#allocation4], %s691
      %s693 = sshll.u32 [#allocation10], 4
      %s694 = int_to_ptr.vmem [resolvable:$true] %s693
      %699 = dma.vmem_to_hbm [thread:$0]  %s694, 1024, %s4, [#allocation4], 64, 64, 4
    $region37: #{tpu_custom_call.1} parent=1 // pred_fallthru
      _
    // Predicated region
    $region38: #{tpu_custom_call.1} parent=1 // pred_check
      _
    $region39: #{tpu_custom_call.1} parent=1 // pred_check_branch
      %701 = sbr.rel (0) target = $region41
    $region40: #{tpu_custom_call.1} parent=1 // pred_region
      %s703 = ssub.s32 2048, 2048
      %704 = vsyncadd [#allocation12], %s703
      %s705 = sshll.u32 [#allocation11], 4
      %s706 = int_to_ptr.vmem [resolvable:$true] %s705
      %711 = dma.vmem_to_hbm [thread:$0]  %s706, 2048, %s5, [#allocation12], 128, 128, 8
    $region41: #{tpu_custom_call.1} parent=1 // pred_fallthru
      _
    // Predicated region
    $region42: #{tpu_custom_call.1} parent=1 // pred_check
      _
    $region43: #{tpu_custom_call.1} parent=1 // pred_check_branch
      %713 = sbr.rel (0) target = $region45
    $region44: #{tpu_custom_call.1} parent=1 // pred_region
      %s715 = ssub.s32 2048, 2048
      %716 = vsyncadd [#allocation12], %s715
      %s717 = sshll.u32 [#allocation13], 4
      %s718 = int_to_ptr.vmem [resolvable:$true] %s717
      %723 = dma.vmem_to_hbm [thread:$0]  %s718, 2048, %s6, [#allocation12], 128, 128, 8
    $region45: #{tpu_custom_call.1} parent=1 // pred_fallthru
      _
    // Predicated region
    $region46: #{tpu_custom_call.1} parent=1 // pred_check
      _
    $region47: #{tpu_custom_call.1} parent=1 // pred_check_branch
      %725 = sbr.rel (0) target = $region49
    $region48: #{tpu_custom_call.1} parent=1 // pred_region
      %726 = dma.done [#allocation4], 1024
    $region49: #{tpu_custom_call.1} parent=1 // pred_fallthru
      _
    // Predicated region
    $region50: #{tpu_custom_call.1} parent=1 // pred_check
      _
    $region51: #{tpu_custom_call.1} parent=1 // pred_check_branch
      %728 = sbr.rel (0) target = $region53
    $region52: #{tpu_custom_call.1} parent=1 // pred_region
      %729 = dma.done [#allocation12], 2048
    $region53: #{tpu_custom_call.1} parent=1 // pred_fallthru
      _
    // Predicated region
    $region54: #{tpu_custom_call.1} parent=1 // pred_check
      _
    $region55: #{tpu_custom_call.1} parent=1 // pred_check_branch
      %731 = sbr.rel (0) target = $region57
    $region56: #{tpu_custom_call.1} parent=1 // pred_region
      %732 = dma.done [#allocation12], 2048
    $region57: #{tpu_custom_call.1} parent=1 // pred_fallthru
      _
    %733 = vsyncpa [#allocation3], 1
    %734 = vsyncpa [#allocation6], 1
    %735 = vsyncpa [#allocation9], 1
    %736 = vsyncpa [#allocation4], 1
    %737 = vsyncpa [#allocation12], 1

</llo_original>
